<compile_context>
chip_gen: v6e
topology: v6e:2x2x1
jax: 0.10.0
libtpu: 0.0.40
codegen_flags: <defaults>
</compile_context>

<pallas_src>
import math

import jax
import jax.numpy as jnp
from jax.experimental import pallas as pl
from jax.experimental.pallas import tpu as pltpu


def _round_up(x, m):
    return -(-x // m) * m


def _bce_dice_kernel(x_ref, t_ref, out_ref, bce_acc, int_acc, psum_acc, tsum_acc):
    j = pl.program_id(1)  # reduction (lane-tile) axis

    @pl.when(j == 0)
    def _init():
        bce_acc[...] = jnp.zeros_like(bce_acc)
        int_acc[...] = jnp.zeros_like(int_acc)
        psum_acc[...] = jnp.zeros_like(psum_acc)
        tsum_acc[...] = jnp.zeros_like(tsum_acc)

    x = x_ref[...]
    t = t_ref[...]

    # One shared transcendental for BCE and sigmoid:
    #   e = exp(-|x|)
    #   BCE-with-logits = max(x, 0) - x*t + log1p(e)          (stable form)
    #   sigmoid(x)      = where(x >= 0, 1, e) / (1 + e)
    e = jnp.exp(-jnp.abs(x))
    bce = jnp.maximum(x, 0.0) - x * t + jnp.log1p(e)
    p = jnp.where(x >= 0.0, 1.0, e) / (1.0 + e)

    bce_acc[...] += jnp.sum(bce, axis=1, keepdims=True)
    int_acc[...] += jnp.sum(p * t, axis=1, keepdims=True)
    psum_acc[...] += jnp.sum(p, axis=1, keepdims=True)
    tsum_acc[...] += jnp.sum(t, axis=1, keepdims=True)

    @pl.when(j == pl.num_programs(1) - 1)
    def _finalize():
        out_ref[:, 0:1] = bce_acc[...]
        out_ref[:, 1:2] = int_acc[...]
        out_ref[:, 2:3] = psum_acc[...]
        out_ref[:, 3:4] = tsum_acc[...]


def _choose_layout(n, d):
    # rows = n*k must be a multiple of 8 (sublane count).
    k = 8 // math.gcd(n, 8)
    # Keep folding lanes into sublane rows while rows are small and each row
    # would still hold at least ~4 lane tiles (keeps pipelining on axis 1).
    while n * k < 256 and d // (2 * k) >= 4 * 2048:
        k *= 2
    rows = n * k

    d2 = _round_up(-(-d // k), 128)           # lane-aligned columns per row
    n_tiles = max(1, d2 // 2048)              # target ~2048-wide lane tiles
    tile_d = _round_up(-(-d2 // n_tiles), 128)
    d2 = n_tiles * tile_d

    # Split rows into independent blocks: >=2 so a "parallel" grid axis can
    # shard across TensorCores (v7x), and cap per-block VMEM footprint.
    tile_r = rows
    n_row_blocks = 1
    while (tile_r % 16 == 0) and (n_row_blocks < 2 or tile_r * tile_d * 4 > 2 * 1024 * 1024):
        tile_r //= 2
        n_row_blocks *= 2
    return k, rows, d2, tile_d, n_tiles, tile_r, n_row_blocks


def bce_dice_loss(logits, target):
    """0.5 * BCEWithLogits(mean) + (1 - mean_n Dice); logits/target share shape (N, ...)."""
    smooth = 1e-05
    n = logits.shape[0]
    d = 1
    for s in logits.shape[1:]:
        d *= s

    k, rows, d2, tile_d, n_tiles, tile_r, n_row_blocks = _choose_layout(n, d)

    x = logits.reshape(n, d).astype(jnp.float32)
    t = target.reshape(n, d).astype(jnp.float32)

    # Pad each sample to k * d2 elements with (logit=-100, target=0): both the
    # BCE term and sigmoid(-100) are (sub)denormal -> contribute ~0 to sums.
    pad = k * d2 - d
    if pad:
        x = jnp.pad(x, ((0, 0), (0, pad)), constant_values=-100.0)
        t = jnp.pad(t, ((0, 0), (0, pad)), constant_values=0.0)
    x = x.reshape(rows, d2)
    t = t.reshape(rows, d2)

    row_spec = pl.BlockSpec((tile_r, tile_d), lambda i, j: (i, j))
    out_spec = pl.BlockSpec((tile_r, 4), lambda i, j: (i, 0))

    sums = pl.pallas_call(
        _bce_dice_kernel,
        out_shape=jax.ShapeDtypeStruct((rows, 4), jnp.float32),
        grid_spec=pltpu.PrefetchScalarGridSpec(
            num_scalar_prefetch=0,
            grid=(n_row_blocks, n_tiles),
            in_specs=[row_spec, row_spec],
            out_specs=out_spec,
            scratch_shapes=[pltpu.VMEM((tile_r, 1), jnp.float32)] * 4,
        ),
        compiler_params=pltpu.CompilerParams(
            dimension_semantics=("parallel", "arbitrary")),
    )(x, t)

    # Each sample owns k consecutive rows; fold partials back to per-sample sums.
    per_sample = sums.reshape(n, k, 4).sum(axis=1)      # (n, 4)
    bce = jnp.sum(per_sample[:, 0]) / (n * d)           # mean over all real elements
    inter, psum, tsum = per_sample[:, 1], per_sample[:, 2], per_sample[:, 3]
    dice = (2.0 * inter + smooth) / (psum + tsum + smooth)
    dice = 1.0 - jnp.sum(dice) / n
    return 0.5 * bce + dice


def _reference(logits, target):
    smooth = 1e-05
    n = logits.shape[0]
    x = logits.reshape(n, -1).astype(jnp.float32)
    t = target.reshape(n, -1).astype(jnp.float32)
    bce = jnp.mean(jnp.maximum(x, 0.0) - x * t + jnp.log1p(jnp.exp(-jnp.abs(x))))
    p = jax.nn.sigmoid(x)
    inter = jnp.sum(p * t, axis=1)
    dice = (2.0 * inter + smooth) / (jnp.sum(p, axis=1) + jnp.sum(t, axis=1) + smooth)
    dice = 1.0 - jnp.sum(dice) / n
    return 0.5 * bce + dice


if __name__ == "__main__":
    key = jax.random.PRNGKey(0)
    k1, k2, k3, k4 = jax.random.split(key, 4)

    # Shape implied by the module (evenly tiled -> no padding path).
    N, C, H, W = 2, 4, 16, 16
    logits = jax.random.normal(k1, (N, C, H, W), dtype=jnp.float32)
    target = (jax.random.uniform(k2, (N, C, H, W)) > 0.5).astype(jnp.float32)
    out = jax.block_until_ready(bce_dice_loss(logits, target))
    ref = _reference(logits, target)
    assert jnp.allclose(out, ref, rtol=1e-5, atol=2e-5), (out, ref)

    # Ragged shape (exercises the sentinel-padding remainder path).
    N2, C2, H2, W2 = 3, 3, 15, 17
    logits2 = jax.random.normal(k3, (N2, C2, H2, W2), dtype=jnp.float32)
    target2 = (jax.random.uniform(k4, (N2, C2, H2, W2)) > 0.5).astype(jnp.float32)
    out2 = jax.block_until_ready(bce_dice_loss(logits2, target2))
    ref2 = _reference(logits2, target2)
    assert jnp.allclose(out2, ref2, rtol=1e-5, atol=2e-5), (out2, ref2)

    print("KERNEL_OK")
</pallas_src>

<mosaic_0001>
module attributes {stable_mosaic.version = 11 : i64} {
  func.func @_bce_dice_kernel(%arg0: i32, %arg1: i32, %arg2: memref<8x256xf32, #tpu.memory_space<vmem>>, %arg3: memref<8x256xf32, #tpu.memory_space<vmem>>, %arg4: memref<8x4xf32, #tpu.memory_space<vmem>>, %arg5: memref<8x1xf32, #tpu.memory_space<vmem>>, %arg6: memref<8x1xf32, #tpu.memory_space<vmem>>, %arg7: memref<8x1xf32, #tpu.memory_space<vmem>>, %arg8: memref<8x1xf32, #tpu.memory_space<vmem>>) attributes {dimension_semantics = [#tpu.dimension_semantics<parallel>, #tpu.dimension_semantics<arbitrary>], iteration_bounds = array<i64: 1, 1>, scalar_prefetch = 0 : i64, scratch_operands = 4 : i64, tpu.core_type = #tpu.core_type<tc>, window_params = [{transform_indices = @transform_0, window_bounds = array<i64: 8, 256>}, {transform_indices = @transform_1, window_bounds = array<i64: 8, 256>}, {transform_indices = @transform_2, window_bounds = array<i64: 8, 4>}]} {
    %c0_i32 = arith.constant 0 : i32
    %0 = arith.cmpi eq, %arg1, %c0_i32 : i32
    %1 = arith.extui %0 : i1 to i32
    %c0_i32_0 = arith.constant 0 : i32
    %2 = arith.cmpi ne, %1, %c0_i32_0 : i32
    scf.if %2 {
      %cst_30 = arith.constant 0.000000e+00 : f32
      %46 = vector.broadcast %cst_30 : f32 to vector<8x1xf32>
      %c0_31 = arith.constant 0 : index
      %c0_32 = arith.constant 0 : index
      %47 = vector.load %arg5[%c0_31, %c0_32] : memref<8x1xf32, #tpu.memory_space<vmem>>, vector<8x1xf32>
      tpu.vector_store %arg5[%c0_31, %c0_32], %46 {strides = array<i32>} : memref<8x1xf32, #tpu.memory_space<vmem>>, vector<8x1xf32>,
      %cst_33 = arith.constant 0.000000e+00 : f32
      %48 = vector.broadcast %cst_33 : f32 to vector<8x1xf32>
      %c0_34 = arith.constant 0 : index
      %c0_35 = arith.constant 0 : index
      %49 = vector.load %arg6[%c0_34, %c0_35] : memref<8x1xf32, #tpu.memory_space<vmem>>, vector<8x1xf32>
      tpu.vector_store %arg6[%c0_34, %c0_35], %48 {strides = array<i32>} : memref<8x1xf32, #tpu.memory_space<vmem>>, vector<8x1xf32>,
      %cst_36 = arith.constant 0.000000e+00 : f32
      %50 = vector.broadcast %cst_36 : f32 to vector<8x1xf32>
      %c0_37 = arith.constant 0 : index
      %c0_38 = arith.constant 0 : index
      %51 = vector.load %arg7[%c0_37, %c0_38] : memref<8x1xf32, #tpu.memory_space<vmem>>, vector<8x1xf32>
      tpu.vector_store %arg7[%c0_37, %c0_38], %50 {strides = array<i32>} : memref<8x1xf32, #tpu.memory_space<vmem>>, vector<8x1xf32>,
      %cst_39 = arith.constant 0.000000e+00 : f32
      %52 = vector.broadcast %cst_39 : f32 to vector<8x1xf32>
      %c0_40 = arith.constant 0 : index
      %c0_41 = arith.constant 0 : index
      %53 = vector.load %arg8[%c0_40, %c0_41] : memref<8x1xf32, #tpu.memory_space<vmem>>, vector<8x1xf32>
      tpu.vector_store %arg8[%c0_40, %c0_41], %52 {strides = array<i32>} : memref<8x1xf32, #tpu.memory_space<vmem>>, vector<8x1xf32>,
    } else {
    }
    %c0 = arith.constant 0 : index
    %c0_1 = arith.constant 0 : index
    %3 = vector.load %arg2[%c0, %c0_1] : memref<8x256xf32, #tpu.memory_space<vmem>>, vector<8x256xf32>
    %c0_2 = arith.constant 0 : index
    %c0_3 = arith.constant 0 : index
    %4 = vector.load %arg3[%c0_2, %c0_3] : memref<8x256xf32, #tpu.memory_space<vmem>>, vector<8x256xf32>
    %5 = math.absf %3 : vector<8x256xf32>
    %cst = arith.constant 0.000000e+00 : f32
    %6 = vector.broadcast %cst : f32 to vector<8x256xf32>
    %7 = arith.subf %6, %5 : vector<8x256xf32>
    %8 = math.exp %7 : vector<8x256xf32>
    %cst_4 = arith.constant 0.000000e+00 : f32
    %9 = vector.broadcast %cst_4 : f32 to vector<8x256xf32>
    %10 = arith.maximumf %3, %9 : vector<8x256xf32>
    %11 = arith.mulf %3, %4 : vector<8x256xf32>
    %12 = arith.subf %10, %11 : vector<8x256xf32>
    %13 = math.log1p %8 : vector<8x256xf32>
    %14 = arith.addf %12, %13 : vector<8x256xf32>
    %cst_5 = arith.constant 0.000000e+00 : f32
    %15 = vector.broadcast %cst_5 : f32 to vector<8x256xf32>
    %16 = arith.cmpf oge, %3, %15 : vector<8x256xf32>
    %cst_6 = arith.constant 1.000000e+00 : f32
    %17 = vector.broadcast %cst_6 : f32 to vector<8x256xf32>
    %18 = arith.select %16, %17, %8 : vector<8x256xi1>, vector<8x256xf32>
    %cst_7 = arith.constant 1.000000e+00 : f32
    %19 = vector.broadcast %cst_7 : f32 to vector<8x256xf32>
    %20 = arith.addf %19, %8 : vector<8x256xf32>
    %21 = arith.divf %18, %20 : vector<8x256xf32>
    %c0_8 = arith.constant 0 : index
    %c0_9 = arith.constant 0 : index
    %22 = vector.load %arg5[%c0_8, %c0_9] : memref<8x1xf32, #tpu.memory_space<vmem>>, vector<8x1xf32>
    %cst_10 = arith.constant dense<0.000000e+00> : vector<8xf32>
    %23 = vector.multi_reduction <add>, %14, %cst_10 [1] : vector<8x256xf32> to vector<8xf32>
    %24 = vector.shape_cast %23 : vector<8xf32> to vector<8x1xf32>
    %25 = arith.addf %22, %24 : vector<8x1xf32>
    %c0_11 = arith.constant 0 : index
    %c0_12 = arith.constant 0 : index
    %26 = vector.load %arg5[%c0_11, %c0_12] : memref<8x1xf32, #tpu.memory_space<vmem>>, vector<8x1xf32>
    tpu.vector_store %arg5[%c0_11, %c0_12], %25 {strides = array<i32>} : memref<8x1xf32, #tpu.memory_space<vmem>>, vector<8x1xf32>,
    %c0_13 = arith.constant 0 : index
    %c0_14 = arith.constant 0 : index
    %27 = vector.load %arg6[%c0_13, %c0_14] : memref<8x1xf32, #tpu.memory_space<vmem>>, vector<8x1xf32>
    %28 = arith.mulf %21, %4 : vector<8x256xf32>
    %cst_15 = arith.constant dense<0.000000e+00> : vector<8xf32>
    %29 = vector.multi_reduction <add>, %28, %cst_15 [1] : vector<8x256xf32> to vector<8xf32>
    %30 = vector.shape_cast %29 : vector<8xf32> to vector<8x1xf32>
    %31 = arith.addf %27, %30 : vector<8x1xf32>
    %c0_16 = arith.constant 0 : index
    %c0_17 = arith.constant 0 : index
    %32 = vector.load %arg6[%c0_16, %c0_17] : memref<8x1xf32, #tpu.memory_space<vmem>>, vector<8x1xf32>
    tpu.vector_store %arg6[%c0_16, %c0_17], %31 {strides = array<i32>} : memref<8x1xf32, #tpu.memory_space<vmem>>, vector<8x1xf32>,
    %c0_18 = arith.constant 0 : index
    %c0_19 = arith.constant 0 : index
    %33 = vector.load %arg7[%c0_18, %c0_19] : memref<8x1xf32, #tpu.memory_space<vmem>>, vector<8x1xf32>
    %cst_20 = arith.constant dense<0.000000e+00> : vector<8xf32>
    %34 = vector.multi_reduction <add>, %21, %cst_20 [1] : vector<8x256xf32> to vector<8xf32>
    %35 = vector.shape_cast %34 : vector<8xf32> to vector<8x1xf32>
    %36 = arith.addf %33, %35 : vector<8x1xf32>
    %c0_21 = arith.constant 0 : index
    %c0_22 = arith.constant 0 : index
    %37 = vector.load %arg7[%c0_21, %c0_22] : memref<8x1xf32, #tpu.memory_space<vmem>>, vector<8x1xf32>
    tpu.vector_store %arg7[%c0_21, %c0_22], %36 {strides = array<i32>} : memref<8x1xf32, #tpu.memory_space<vmem>>, vector<8x1xf32>,
    %c0_23 = arith.constant 0 : index
    %c0_24 = arith.constant 0 : index
    %38 = vector.load %arg8[%c0_23, %c0_24] : memref<8x1xf32, #tpu.memory_space<vmem>>, vector<8x1xf32>
    %cst_25 = arith.constant dense<0.000000e+00> : vector<8xf32>
    %39 = vector.multi_reduction <add>, %4, %cst_25 [1] : vector<8x256xf32> to vector<8xf32>
    %40 = vector.shape_cast %39 : vector<8xf32> to vector<8x1xf32>
    %41 = arith.addf %38, %40 : vector<8x1xf32>
    %c0_26 = arith.constant 0 : index
    %c0_27 = arith.constant 0 : index
    %42 = vector.load %arg8[%c0_26, %c0_27] : memref<8x1xf32, #tpu.memory_space<vmem>>, vector<8x1xf32>
    tpu.vector_store %arg8[%c0_26, %c0_27], %41 {strides = array<i32>} : memref<8x1xf32, #tpu.memory_space<vmem>>, vector<8x1xf32>,
    %c0_i32_28 = arith.constant 0 : i32
    %43 = arith.cmpi eq, %arg1, %c0_i32_28 : i32
    %44 = arith.extui %43 : i1 to i32
    %c0_i32_29 = arith.constant 0 : i32
    %45 = arith.cmpi ne, %44, %c0_i32_29 : i32
    scf.if %45 {
      %c0_30 = arith.constant 0 : index
      %c0_31 = arith.constant 0 : index
      %46 = vector.load %arg5[%c0_30, %c0_31] : memref<8x1xf32, #tpu.memory_space<vmem>>, vector<8x1xf32>
      %c0_32 = arith.constant 0 : index
      %c0_33 = arith.constant 0 : index
      %47 = vector.load %arg4[%c0_32, %c0_33] : memref<8x4xf32, #tpu.memory_space<vmem>>, vector<8x1xf32>
      tpu.vector_store %arg4[%c0_32, %c0_33], %46 {strides = array<i32>} : memref<8x4xf32, #tpu.memory_space<vmem>>, vector<8x1xf32>,
      %c0_34 = arith.constant 0 : index
      %c0_35 = arith.constant 0 : index
      %48 = vector.load %arg6[%c0_34, %c0_35] : memref<8x1xf32, #tpu.memory_space<vmem>>, vector<8x1xf32>
      %c0_36 = arith.constant 0 : index
      %c1 = arith.constant 1 : index
      %49 = vector.load %arg4[%c0_36, %c1] : memref<8x4xf32, #tpu.memory_space<vmem>>, vector<8x1xf32>
      tpu.vector_store %arg4[%c0_36, %c1], %48 {strides = array<i32>} : memref<8x4xf32, #tpu.memory_space<vmem>>, vector<8x1xf32>,
      %c0_37 = arith.constant 0 : index
      %c0_38 = arith.constant 0 : index
      %50 = vector.load %arg7[%c0_37, %c0_38] : memref<8x1xf32, #tpu.memory_space<vmem>>, vector<8x1xf32>
      %c0_39 = arith.constant 0 : index
      %c2 = arith.constant 2 : index
      %51 = vector.load %arg4[%c0_39, %c2] : memref<8x4xf32, #tpu.memory_space<vmem>>, vector<8x1xf32>
      tpu.vector_store %arg4[%c0_39, %c2], %50 {strides = array<i32>} : memref<8x4xf32, #tpu.memory_space<vmem>>, vector<8x1xf32>,
      %c0_40 = arith.constant 0 : index
      %c0_41 = arith.constant 0 : index
      %52 = vector.load %arg8[%c0_40, %c0_41] : memref<8x1xf32, #tpu.memory_space<vmem>>, vector<8x1xf32>
      %c0_42 = arith.constant 0 : index
      %c3 = arith.constant 3 : index
      %53 = vector.load %arg4[%c0_42, %c3] : memref<8x4xf32, #tpu.memory_space<vmem>>, vector<8x1xf32>
      tpu.vector_store %arg4[%c0_42, %c3], %52 {strides = array<i32>} : memref<8x4xf32, #tpu.memory_space<vmem>>, vector<8x1xf32>,
    } else {
    }
    return
  }
  func.func @transform_0(%arg0: i32, %arg1: i32) -> (i32, i32) {
    %c0_i32 = arith.constant 0 : i32
    return %arg0, %arg1 : i32, i32
  }
  func.func @transform_1(%arg0: i32, %arg1: i32) -> (i32, i32) {
    %c0_i32 = arith.constant 0 : i32
    return %arg0, %arg1 : i32, i32
  }
  func.func @transform_2(%arg0: i32, %arg1: i32) -> (i32, i32) {
    %c0_i32 = arith.constant 0 : i32
    %c0_i32_0 = arith.constant 0 : i32
    return %arg0, %c0_i32 : i32, i32
  }
}

</mosaic_0001>

<llo_original>
// kernel: tpu_custom_call.1
$region0: #{tpu_custom_call.1}
  #allocation0 [shape = 'u32[]', space=smem, size = 0x4, offset = 0x4, fixed_abs, tag = 'smem constant byte address 0x4 - core index']
  #allocation1 [shape = 'u32[144,128]{1,0:T(1,128)}', space=vmem, size = 0x12000, scoped, tag = 'internal scratch']
  #allocation2 [shape = 'f32[8,1]{1,0:T(8,128)}', space=vmem, size = 0x1000, scoped, tag = 'scratch operand']
  #allocation3 [shape = 'f32[8,1]{1,0:T(8,128)}', space=vmem, size = 0x1000, scoped, tag = 'scratch operand']
  #allocation4 [shape = 'f32[8,1]{1,0:T(8,128)}', space=vmem, size = 0x1000, scoped, tag = 'scratch operand']
  #allocation5 [shape = 'f32[8,1]{1,0:T(8,128)}', space=vmem, size = 0x1000, scoped, tag = 'scratch operand']
  %s0 = inlined_call_operand.hbm [shape: f32[8,256], index: 0, kind: input, shape index: {}]
  %s1 = inlined_call_operand.hbm [shape: f32[8,256], index: 1, kind: input, shape index: {}]
  %s2 = inlined_call_operand.vmem [shape: f32[8,4], index: 2, kind: output, shape index: {}]
  %s3 = sld [smem:[#allocation0]]
  $region34: #{tpu_custom_call.1} parent=0
    _
  %s5 = ssub.s32 1, %s3
  %s6 = scalar_select 0, %s5, %s3
  $region1: #{tpu_custom_call.1} parent=0
    #allocation6 [shape = 'u8[8192]{0}', space=vmem, size = 0x2000, scoped, tag = 'input window, operand 0, single buffered']
    #allocation7 [shape = 's32[1]{0}', space=sflag, size = 0x4, scoped, tag = 'scoped memory for tpu_custom_call.1']
    #allocation8 [shape = 'u8[8192]{0}', space=vmem, size = 0x2000, scoped, tag = 'input window, operand 1, single buffered']
    #allocation9 [shape = 's32[1]{0}', space=sflag, size = 0x4, scoped, tag = 'scoped memory for tpu_custom_call.1']
    %7 = vsyncpa [#allocation7], 0
    %8 = vsyncpa [#allocation9], 0
    // Predicated region
    $region2: #{tpu_custom_call.1} parent=1 // pred_check
      _
    $region3: #{tpu_custom_call.1} parent=1 // pred_check_branch
      %10 = sbr.rel (0) target = $region5
    $region4: #{tpu_custom_call.1} parent=1 // pred_region
      %s12 = ssub.s32 256, 256
      %13 = vsyncadd [#allocation7], %s12
      %s15 = sshll.u32 [#allocation6], 4
      %s16 = int_to_ptr.vmem [resolvable:$true] %s15
      %18 = dma.hbm_to_vmem [thread:$0]  %s0, 256, %s16, [#allocation7]
    $region5: #{tpu_custom_call.1} parent=1 // pred_fallthru
      _
    // Predicated region
    $region6: #{tpu_custom_call.1} parent=1 // pred_check
      _
    $region7: #{tpu_custom_call.1} parent=1 // pred_check_branch
      %20 = sbr.rel (0) target = $region9
    $region8: #{tpu_custom_call.1} parent=1 // pred_region
      %s22 = ssub.s32 256, 256
      %23 = vsyncadd [#allocation9], %s22
      %s25 = sshll.u32 [#allocation8], 4
      %s26 = int_to_ptr.vmem [resolvable:$true] %s25
      %28 = dma.hbm_to_vmem [thread:$0]  %s1, 256, %s26, [#allocation9]
    $region9: #{tpu_custom_call.1} parent=1 // pred_fallthru
      _
    // Predicated region
    $region10: #{tpu_custom_call.1} parent=1 // pred_check
      _
    $region11: #{tpu_custom_call.1} parent=1 // pred_check_branch
      %30 = sbr.rel (0) target = $region13
    $region12: #{tpu_custom_call.1} parent=1 // pred_region
      %31 = dma.done [#allocation7], 256
    $region13: #{tpu_custom_call.1} parent=1 // pred_fallthru
      _
    // Predicated region
    $region14: #{tpu_custom_call.1} parent=1 // pred_check
      _
    $region15: #{tpu_custom_call.1} parent=1 // pred_check_branch
      %33 = sbr.rel (0) target = $region17
    $region16: #{tpu_custom_call.1} parent=1 // pred_region
      %34 = dma.done [#allocation9], 256
    $region17: #{tpu_custom_call.1} parent=1 // pred_fallthru
      _
    %p35 = scmp.eq.s32.totalorder 0, 0
    // Predicated region
    $region18: #{tpu_custom_call.1} parent=1 // pred_check
      %p36 = pneg %p35
    $region19: #{tpu_custom_call.1} parent=1 // pred_check_branch
      %38 = sbr.rel (%p36) target = $region21
    $region20: #{tpu_custom_call.1} parent=1 // pred_region
      %vm39 = vcmask 7168
      %40 = vst.msk [vmem:[#allocation2] sm:$0xff] %vm39, 0.0
      %41 = vst.msk [vmem:[#allocation3] sm:$0xff] %vm39, 0.0
      %42 = vst.msk [vmem:[#allocation4] sm:$0xff] %vm39, 0.0
      %43 = vst.msk [vmem:[#allocation5] sm:$0xff] %vm39, 0.0
    $region21: #{tpu_custom_call.1} parent=1 // pred_fallthru
      _
    %v44 = vld [vmem:[#allocation6] sm:$0xff]
    %v45 = vld [vmem:[#allocation6 + $0x8] sm:$0xff]
    %v46 = vld [vmem:[#allocation8] sm:$0xff]
    %v47 = vld [vmem:[#allocation8 + $0x8] sm:$0xff]
    %v48 = vand.u32 2147483647, %v44
    %v49 = vand.u32 2147483647, %v45
    %v50 = vsub.f32 0.0, %v48
    %v51 = vsub.f32 0.0, %v49
    %v52 = vmul.f32 %v50, 1.442695
    %v53 = vpow.pop %v52
    %v54 = vmul.f32 %v51, 1.442695
    %v55 = vpow.pop %v54
    %v56 = vmax.f32 %v44, 0.0
    %v57 = vmax.f32 %v45, 0.0
    %v58 = vmul.f32 %v44, %v46
    %v59 = vmul.f32 %v45, %v47
    %v60 = vsub.f32 %v56, %v58
    %v61 = vsub.f32 %v57, %v59
    %v62 = vadd.f32 %v53, 1.0
    %v63 = vlog2.pop %v62
    %v64 = vmul.f32 %v63, 0.6931472
    %v65 = vmul.f32 -0.5, %v53
    %v66 = vadd.f32 %v65, 1.0
    %v67 = vmul.f32 %v66, %v53
    %v68 = vand.u32 2147483647, %v53
    %vm69 = vcmp.lt.f32.partialorder %v68, 0.0004427343
    %v70 = vsel %vm69, %v67, %v64
    %v71 = vadd.f32 %v55, 1.0
    %v72 = vlog2.pop %v71
    %v73 = vmul.f32 %v72, 0.6931472
    %v74 = vmul.f32 -0.5, %v55
    %v75 = vadd.f32 %v74, 1.0
    %v76 = vmul.f32 %v75, %v55
    %v77 = vand.u32 2147483647, %v55
    %vm78 = vcmp.lt.f32.partialorder %v77, 0.0004427343
    %v79 = vsel %vm78, %v76, %v73
    %v80 = vadd.f32 %v60, %v70
    %v81 = vadd.f32 %v61, %v79
    %vm82 = vcmp.ge.f32.partialorder %v44, 0.0
    %vm83 = vcmp.ge.f32.partialorder %v45, 0.0
    %v84 = vsel %vm82, 1.0, %v53
    %v85 = vsel %vm83, 1.0, %v55
    %v86 = vadd.f32 %v53, 1.0
    %v87 = vadd.f32 %v55, 1.0
    %v88 = vrcp.pop %v86
    %v89 = vmul.f32 %v84, %v88
    %v90 = vrcp.pop %v87
    %v91 = vmul.f32 %v85, %v90
    %v92 = vld [vmem:[#allocation2] sm:$0xff]
    %v93 = vadd.f32 %v80, %v81
    %94 = vadd.xlane.f32.xlu0 %v93
    %v95 = vpop.xlane.xlu0 %94
    %v96 = vadd.f32 %v92, %v95
    %vm97 = vcmask 7168
    %98 = vst.msk [vmem:[#allocation2] sm:$0xff] %vm97, %v96
    %v99 = vld [vmem:[#allocation3] sm:$0xff]
    %v100 = vmul.f32 %v89, %v46
    %v101 = vmul.f32 %v91, %v47
    %v102 = vadd.f32 %v100, %v101
    %103 = vadd.xlane.f32.xlu0 %v102
    %v104 = vpop.xlane.xlu0 %103
    %v105 = vadd.f32 %v99, %v104
    %106 = vst.msk [vmem:[#allocation3] sm:$0xff] %vm97, %v105
    %v107 = vld [vmem:[#allocation4] sm:$0xff]
    %v108 = vadd.f32 %v89, %v91
    %109 = vadd.xlane.f32.xlu0 %v108
    %v110 = vpop.xlane.xlu0 %109
    %v111 = vadd.f32 %v107, %v110
    %112 = vst.msk [vmem:[#allocation4] sm:$0xff] %vm97, %v111
    %v113 = vld [vmem:[#allocation5] sm:$0xff]
    %v114 = vadd.f32 %v46, %v47
    %115 = vadd.xlane.f32.xlu0 %v114
    %v116 = vpop.xlane.xlu0 %115
    %v117 = vadd.f32 %v113, %v116
    %118 = vst.msk [vmem:[#allocation5] sm:$0xff] %vm97, %v117
    // Predicated region
    $region22: #{tpu_custom_call.1} parent=1 // pred_check
      %p119 = pneg %p35
    $region23: #{tpu_custom_call.1} parent=1 // pred_check_branch
      %121 = sbr.rel (%p119) target = $region25
    $region24: #{tpu_custom_call.1} parent=1 // pred_region
      %v122 = vld [vmem:[#allocation2] sm:$0xff]
      %123 = vst.msk [vmem:[%s2] sm:$0xff] %vm97, %v122
      %v124 = vld [vmem:[#allocation3] sm:$0xff]
      %126 = vrot.lane.b32.xlu0 %v124, 1
      %v127 = vpop.permute.xlu0 %126
      %vm129 = vcmask 15368
      %130 = vst.msk [vmem:[%s2] sm:$0xff] %vm129, %v127
      %v131 = vld [vmem:[#allocation4] sm:$0xff]
      %133 = vrot.lane.b32.xlu0 %v131, 2
      %v134 = vpop.permute.xlu0 %133
      %vm136 = vcmask 23568
      %137 = vst.msk [vmem:[%s2] sm:$0xff] %vm136, %v134
      %v138 = vld [vmem:[#allocation5] sm:$0xff]
      %140 = vrot.lane.b32.xlu0 %v138, 3
      %v141 = vpop.permute.xlu0 %140
      %vm143 = vcmask 31768
      %144 = vst.msk [vmem:[%s2] sm:$0xff] %vm143, %v141
    $region25: #{tpu_custom_call.1} parent=1 // pred_fallthru
      _
    // Predicated region
    $region26: #{tpu_custom_call.1} parent=1 // pred_check
      _
    $region27: #{tpu_custom_call.1} parent=1 // pred_check_branch
      %146 = sbr.rel (0) target = $region29
    $region28: #{tpu_custom_call.1} parent=1 // pred_region
      _
    $region29: #{tpu_custom_call.1} parent=1 // pred_fallthru
      _
    // Predicated region
    $region30: #{tpu_custom_call.1} parent=1 // pred_check
      _
    $region31: #{tpu_custom_call.1} parent=1 // pred_check_branch
      %148 = sbr.rel (0) target = $region33
    $region32: #{tpu_custom_call.1} parent=1 // pred_region
      _
    $region33: #{tpu_custom_call.1} parent=1 // pred_fallthru
      _
    %149 = vsyncpa [#allocation7], 1
    %150 = vsyncpa [#allocation9], 1

</llo_original>
